<compile_context>
chip_gen: v7x
topology: tpu7x:2x2x1
jax: 0.10.0
libtpu: 0.0.40
codegen_flags: <defaults>
</compile_context>

<pallas_src>
import functools

import jax
import jax.numpy as jnp
import numpy as np
from jax import lax
from jax.experimental import pallas as pl
from jax.experimental.pallas import tpu as pltpu


# --------------------------------------------------------------------------- #
# pltpu.roll direction probe (tiny one-off kernel, cached).                    #
# --------------------------------------------------------------------------- #
@functools.lru_cache(maxsize=None)
def _roll_is_jnp_like():
    """True iff pltpu.roll matches jnp.roll (result[i] = x[(i - shift) % n])."""
    def k(x_ref, o_ref):
        o_ref[...] = pltpu.roll(x_ref[...], shift=1, axis=1)
    probe = jnp.arange(8 * 128, dtype=jnp.float32).reshape(8, 128)
    rolled = pl.pallas_call(
        k, out_shape=jax.ShapeDtypeStruct((8, 128), jnp.float32))(probe)
    return bool(np.asarray(rolled)[0, 0] == 127.0)


def _partner_shift(delta, length):
    """Static shift s so that pltpu.roll(x, s, axis)[l] == x[(l + delta) % length]."""
    if _roll_is_jnp_like():
        return (length - delta) % length
    return delta % length


# --------------------------------------------------------------------------- #
# Kernel                                                                       #
# --------------------------------------------------------------------------- #
def _encoder_kernel(x_ref, band1_ref, b1_ref, band2_ref, b2_ref, out_ref,
                    xpad1_ref, xpad2_ref, *,
                    ph, kh, kw, s_pool1, s_pool2, s_avg):
    # x_ref    : (bb, H, W*Cin)      bf16   channel-folded input rows
    # band1_ref: (3, W*Cin, W*C1)    bf16   conv1 banded weights (one per dy)
    # b1_ref   : (1, W*C1)           f32
    # band2_ref: (3, W*C1, Wq*C2)    bf16   conv2 banded weights (one per dy)
    # b2_ref   : (1, Wq*C2)          f32
    # out_ref  : (bb, ph, Wq*C2)     f32    lane-dense output slab
    # xpad1_ref: (bb, H+2, W*Cin)    bf16   zero-row-padded input   (scratch)
    # xpad2_ref: (bb, Hq+2, W*C1)    bf16   zero-row-padded pooled  (scratch)
    bb, H, WCin = x_ref.shape
    WC1 = band1_ref.shape[2]
    WqC2 = band2_ref.shape[2]
    Hq = H // 2
    Hr = Hq // 2
    f32 = jnp.float32
    bf16 = jnp.bfloat16

    # ---- conv1 input: zero-row-padded, channel-folded rows ------------------
    # (W-direction zero padding lives inside band1; only zero ROWS are needed.)
    xpad1_ref[:, 0:1, :] = jnp.zeros((bb, 1, WCin), bf16)
    xpad1_ref[:, H + 1:H + 2, :] = jnp.zeros((bb, 1, WCin), bf16)
    xpad1_ref[:, 1:H + 1, :] = x_ref[...]

    # ---- conv1: 3 banded matmuls (one per dy), K = W*Cin ---------------------
    h1 = jnp.dot(xpad1_ref[:, 0:H, :].reshape(bb * H, WCin), band1_ref[0],
                 preferred_element_type=f32)
    for dy in (1, 2):
        h1 = h1 + jnp.dot(xpad1_ref[:, dy:dy + H, :].reshape(bb * H, WCin),
                          band1_ref[dy], preferred_element_type=f32)
    h1 = jnp.maximum(h1 + b1_ref[...], 0.0)                     # (bb*H, W*C1) f32

    # ---- MaxPool2d(2) #1: W via XLU lane roll, H via row reshape -------------
    m1 = jnp.maximum(h1, pltpu.roll(h1, shift=s_pool1, axis=1))  # pair (2w, 2w+1)
    m1 = m1.reshape(bb, Hq, 2, WC1)
    p1 = jnp.maximum(m1[:, :, 0, :], m1[:, :, 1, :])             # valid @ even C1-blocks

    # ---- conv2 input: zero-row-padded pooled rows (bf16 scratch) -------------
    xpad2_ref[:, 0:1, :] = jnp.zeros((bb, 1, WC1), bf16)
    xpad2_ref[:, Hq + 1:Hq + 2, :] = jnp.zeros((bb, 1, WC1), bf16)
    xpad2_ref[:, 1:Hq + 1, :] = p1.astype(bf16)

    # ---- conv2: 3 banded matmuls, K = W*C1 (odd C1-blocks hit zero band rows)
    h2 = jnp.dot(xpad2_ref[:, 0:Hq, :].reshape(bb * Hq, WC1), band2_ref[0],
                 preferred_element_type=f32)
    for dy in (1, 2):
        h2 = h2 + jnp.dot(xpad2_ref[:, dy:dy + Hq, :].reshape(bb * Hq, WC1),
                          band2_ref[dy], preferred_element_type=f32)
    h2 = jnp.maximum(h2 + b2_ref[...], 0.0)                      # (bb*Hq, Wq*C2) f32

    # ---- MaxPool2d(2) #2 ------------------------------------------------------
    m2 = jnp.maximum(h2, pltpu.roll(h2, shift=s_pool2, axis=1))
    m2 = m2.reshape(bb, Hr, 2, WqC2)
    p2 = jnp.maximum(m2[:, :, 0, :], m2[:, :, 1, :]).reshape(bb * Hr, WqC2)

    # ---- adaptive_avg_pool2d((ph, pw)), evenly divisible (kh x kw bins) ------
    s = p2
    for shift in s_avg:                                          # W-direction sums
        s = s + pltpu.roll(p2, shift=shift, axis=1)
    s = s.reshape(bb, ph, kh, WqC2)                              # H-direction sums
    r = jnp.sum(s, axis=2) * (1.0 / float(kh * kw))              # (bb, ph, Wq*C2)

    # ---- single full-width lane-dense store ----------------------------------
    out_ref[...] = r


# --------------------------------------------------------------------------- #
# Wrapper                                                                      #
# --------------------------------------------------------------------------- #
def _pick_batch_block(batch, max_block=8):
    """Largest divisor of `batch` that keeps >= 2 grid steps (and <= max_block)."""
    cap = min(max_block, max(1, batch // 2))
    bb = 1
    for d in range(1, cap + 1):
        if batch % d == 0:
            bb = d
    return bb


def _banded_conv_weights(w1, w2, W):
    """Fold the 3x3 dx taps and the W-direction zero padding into band matrices.

    band1[dy][w_in*Cin + ci, w_out*C1 + c1] = w1[dy, dx, ci, c1],  w_in = w_out+dx-1
    band2[dy][2*w_in*C1 + c1, w_out*C2 + c2] = w2[dy, dx, c1, c2]  (pooled pixels sit
                                               at even C1-blocks after the W maxpool)
    Out-of-range taps are simply omitted == SAME zero padding.
    """
    Cin, C1 = w1.shape[2], w1.shape[3]
    C2 = w2.shape[3]
    Wq = W // 2

    band1 = []
    for dy in range(3):
        acc = jnp.zeros((W * Cin, W * C1), jnp.float32)
        for dx in range(3):
            sel = np.eye(W, k=1 - dx, dtype=np.float32)          # w_in = w_out + dx - 1
            blk = jnp.einsum('pq,ic->piqc', sel, w1[dy, dx].astype(jnp.float32))
            acc = acc + blk.reshape(W * Cin, W * C1)
        band1.append(acc)
    band1 = jnp.stack(band1).astype(jnp.bfloat16)                # (3, W*Cin, W*C1)

    band2 = []
    for dy in range(3):
        acc = jnp.zeros((W * C1, Wq * C2), jnp.float32)
        for dx in range(3):
            sel = np.zeros((W, Wq), np.float32)
            for w_out in range(Wq):
                w_in = w_out + dx - 1
                if 0 <= w_in < Wq:
                    sel[2 * w_in, w_out] = 1.0                   # even C1-block rows
            blk = jnp.einsum('pq,ic->piqc', sel, w2[dy, dx].astype(jnp.float32))
            acc = acc + blk.reshape(W * C1, Wq * C2)
        band2.append(acc)
    band2 = jnp.stack(band2).astype(jnp.bfloat16)                # (3, W*C1, Wq*C2)
    return band1, band2


def sinogram_block_encoder(x, params, pool_size=(4, 4)):
    """x: (B, H, W, Cin) float32 NHWC.  Returns (B, C_out, ph*pw) like PyTorch."""
    w1, b1, w2, b2 = params
    B, H, W, Cin = x.shape
    C1 = w1.shape[-1]
    C2 = w2.shape[-1]
    ph, pw = pool_size
    Hq, Wq = H // 2, W // 2
    Hr, Wr = Hq // 2, Wq // 2
    assert H % 4 == 0 and W % 4 == 0
    # TODO(synk): only the evenly-divisible adaptive_avg_pool2d case is handled
    # in-kernel; PyTorch's non-uniform adaptive bins are not.
    assert Hr % ph == 0 and Wr % pw == 0
    kh, kw = Hr // ph, Wr // pw

    bb = _pick_batch_block(B)

    # Lane-dense, channel-folded bf16 input rows (one row = W*Cin lanes).
    xf = x.astype(jnp.bfloat16).reshape(B, H, W * Cin)

    band1, band2 = _banded_conv_weights(w1, w2, W)
    b1_row = jnp.tile(b1.astype(jnp.float32), W).reshape(1, W * C1)
    b2_row = jnp.tile(b2.astype(jnp.float32), Wq).reshape(1, Wq * C2)

    # Static roll shifts ("fetch the value `delta` lanes to the right").
    s_pool1 = _partner_shift(C1, W * C1)
    s_pool2 = _partner_shift(C2, Wq * C2)
    s_avg = tuple(_partner_shift(2 * dj * C2, Wq * C2) for dj in range(1, kw))

    kernel = functools.partial(
        _encoder_kernel, ph=ph, kh=kh, kw=kw,
        s_pool1=s_pool1, s_pool2=s_pool2, s_avg=s_avg)

    out = pl.pallas_call(
        kernel,
        grid=(B // bb,),
        in_specs=[
            pl.BlockSpec((bb, H, W * Cin), lambda b: (b, 0, 0)),
            pl.BlockSpec((3, W * Cin, W * C1), lambda b: (0, 0, 0)),
            pl.BlockSpec((1, W * C1), lambda b: (0, 0)),
            pl.BlockSpec((3, W * C1, Wq * C2), lambda b: (0, 0, 0)),
            pl.BlockSpec((1, Wq * C2), lambda b: (0, 0)),
        ],
        out_specs=pl.BlockSpec((bb, ph, Wq * C2), lambda b: (b, 0, 0)),
        out_shape=jax.ShapeDtypeStruct((B, ph, Wq * C2), jnp.float32),
        scratch_shapes=[
            pltpu.VMEM((bb, H + 2, W * Cin), jnp.bfloat16),   # zero-row-padded input
            pltpu.VMEM((bb, Hq + 2, W * C1), jnp.bfloat16),   # zero-row-padded pooled map
        ],
        compiler_params=pltpu.CompilerParams(
            dimension_semantics=("parallel",),                # v7x: batch axis over 2 TCs
            vmem_limit_bytes=32 * 1024 * 1024),               # explicit budget, all gens
    )(xf, band1, b1_row, band2, b2_row)

    # Valid channels sit at lane offset 0 of every (2*kw*C2)-lane group.
    o = out.reshape(B, ph, pw, 2 * kw * C2)[..., :C2]         # (B, ph, pw, C2)
    return o.transpose(0, 3, 1, 2).reshape(B, C2, ph * pw)    # torch flatten(2)


# --------------------------------------------------------------------------- #
# Pure-JAX reference and self-test                                             #
# --------------------------------------------------------------------------- #
def reference(x, params, pool_size=(4, 4)):
    """Pure-JAX (XLA) reference of the PyTorch forward, NHWC / HWIO."""
    w1, b1, w2, b2 = params
    ph, pw = pool_size
    dn = ('NHWC', 'HWIO', 'NHWC')
    y = lax.conv_general_dilated(x, w1, (1, 1), 'SAME', dimension_numbers=dn) + b1
    y = jnp.maximum(y, 0.0)
    y = lax.reduce_window(y, -jnp.inf, lax.max, (1, 2, 2, 1), (1, 2, 2, 1), 'VALID')
    y = lax.conv_general_dilated(y, w2, (1, 1), 'SAME', dimension_numbers=dn) + b2
    y = jnp.maximum(y, 0.0)
    y = lax.reduce_window(y, -jnp.inf, lax.max, (1, 2, 2, 1), (1, 2, 2, 1), 'VALID')
    B, Hr, Wr, C2 = y.shape
    kh, kw = Hr // ph, Wr // pw
    y = y.reshape(B, ph, kh, pw, kw, C2).mean(axis=(2, 4))
    return y.transpose(0, 3, 1, 2).reshape(B, C2, ph * pw)


if __name__ == "__main__":
    key = jax.random.PRNGKey(0)
    B, H, W, Cin = 2, 32, 32, 4          # small NHWC sinogram block
    C1, C2 = 64, 32                      # hidden (fixed 64) / out channels
    pool_size = (4, 4)

    k = jax.random.split(key, 5)
    x = jax.random.normal(k[0], (B, H, W, Cin), jnp.float32)
    w1 = jax.random.normal(k[1], (3, 3, Cin, C1), jnp.float32) * 0.10
    b1 = jax.random.normal(k[2], (C1,), jnp.float32) * 0.10
    w2 = jax.random.normal(k[3], (3, 3, C1, C2), jnp.float32) * 0.05
    b2 = jax.random.normal(k[4], (C2,), jnp.float32) * 0.10
    params = (w1, b1, w2, b2)

    out = jax.block_until_ready(sinogram_block_encoder(x, params, pool_size))
    assert out.shape == (B, C2, pool_size[0] * pool_size[1])

    ref = reference(x, params, pool_size)
    # bf16 MXU operands with f32 accumulation -> loosened tolerance vs f32 ref.
    np.testing.assert_allclose(np.asarray(out), np.asarray(ref),
                               rtol=2e-2, atol=2e-2)
    print("KERNEL_OK")
</pallas_src>

<mosaic_0001>
module attributes {stable_mosaic.version = 11 : i64} {
  func.func @k(%arg0: memref<8x128xf32, #tpu.memory_space<vmem>>, %arg1: memref<8x128xf32, #tpu.memory_space<vmem>>) attributes {dimension_semantics = [], scalar_prefetch = 0 : i64, scratch_operands = 0 : i64, tpu.core_type = #tpu.core_type<tc>} {
    %c0 = arith.constant 0 : index
    %c0_0 = arith.constant 0 : index
    %0 = vector.load %arg0[%c0, %c0_0] : memref<8x128xf32, #tpu.memory_space<vmem>>, vector<8x128xf32>
    %c1_i32 = arith.constant 1 : i32
    %1 = tpu.dynamic_rotate %0 by %c1_i32 dim 1 : vector<8x128xf32>, i32 -> vector<8x128xf32>
    %c0_1 = arith.constant 0 : index
    %c0_2 = arith.constant 0 : index
    %2 = vector.load %arg1[%c0_1, %c0_2] : memref<8x128xf32, #tpu.memory_space<vmem>>, vector<8x128xf32>
    tpu.vector_store %arg1[%c0_1, %c0_2], %1 {strides = array<i32>} : memref<8x128xf32, #tpu.memory_space<vmem>>, vector<8x128xf32>,
    return
  }
}

</mosaic_0001>

<llo_original>
// kernel: tpu_custom_call.1
$region0: #{tpu_custom_call.1}
  #allocation0 [shape = 'u32[]', space=smem, size = 0x4, offset = 0x4, fixed_abs, tag = 'smem constant byte address 0x4 - core index']
  #allocation1 [shape = 'u32[144,128]{1,0:T(1,128)}', space=vmem, size = 0x12000, scoped, tag = 'internal scratch']
  %s0 = inlined_call_operand.hbm [shape: f32[8,128], index: 0, kind: input, shape index: {}]
  %s1 = inlined_call_operand.hbm [shape: f32[8,128], index: 1, kind: output, shape index: {}]
  %s2 = sld [smem:[#allocation0]]
  $region18: #{tpu_custom_call.1} parent=0
    _
  %s4 = ssub.s32 1, %s2
  %s5 = scalar_select 0, %s4, %s2
  $region1: #{tpu_custom_call.1} parent=0
    #allocation2 [shape = 'u8[4096]{0}', space=vmem, size = 0x1000, scoped, tag = 'input window, operand 0, single buffered']
    #allocation3 [shape = 's32[1]{0}', space=sflag, size = 0x4, scoped, tag = 'scoped memory for tpu_custom_call.1']
    #allocation4 [shape = 's32[1]{0}', space=sflag, size = 0x4, scoped, tag = 'scoped memory for tpu_custom_call.1']
    #allocation5 [shape = 'u8[4096]{0}', space=vmem, size = 0x1000, scoped, tag = 'output window, operand 0, single buffered']
    %6 = vsyncpa [#allocation3], 0
    %7 = vsyncpa [#allocation4], 0
    // Predicated region
    $region2: #{tpu_custom_call.1} parent=1 // pred_check
      _
    $region3: #{tpu_custom_call.1} parent=1 // pred_check_branch
      %9 = sbr.rel (0) target = $region5
    $region4: #{tpu_custom_call.1} parent=1 // pred_region
      %s11 = ssub.s32 128, 128
      %12 = vsyncadd [#allocation3], %s11
      %s14 = sshll.u32 [#allocation2], 4
      %s15 = int_to_ptr.vmem [resolvable:$true] %s14
      %17 = dma.hbm_to_vmem [thread:$0]  %s0, 128, %s15, [#allocation3]
    $region5: #{tpu_custom_call.1} parent=1 // pred_fallthru
      _
    // Predicated region
    $region6: #{tpu_custom_call.1} parent=1 // pred_check
      _
    $region7: #{tpu_custom_call.1} parent=1 // pred_check_branch
      %19 = sbr.rel (0) target = $region9
    $region8: #{tpu_custom_call.1} parent=1 // pred_region
      %20 = dma.done [#allocation3], 128
    $region9: #{tpu_custom_call.1} parent=1 // pred_fallthru
      _
    %v21 = vld [vmem:[#allocation2] sm:$0xff]
    %22 = vrot.lane.b32.xlu0 %v21, 1
    %v23 = vpop.permute.xlu0 %22
    %24 = vst [vmem:[#allocation5] sm:$0xff] %v23
    // Predicated region
    $region10: #{tpu_custom_call.1} parent=1 // pred_check
      _
    $region11: #{tpu_custom_call.1} parent=1 // pred_check_branch
      %26 = sbr.rel (0) target = $region13
    $region12: #{tpu_custom_call.1} parent=1 // pred_region
      %s28 = ssub.s32 128, 128
      %29 = vsyncadd [#allocation4], %s28
      %s31 = sshll.u32 [#allocation5], 4
      %s32 = int_to_ptr.vmem [resolvable:$true] %s31
      %34 = dma.vmem_to_hbm [thread:$0]  %s32, 128, %s1, [#allocation4]
    $region13: #{tpu_custom_call.1} parent=1 // pred_fallthru
      _
    // Predicated region
    $region14: #{tpu_custom_call.1} parent=1 // pred_check
      _
    $region15: #{tpu_custom_call.1} parent=1 // pred_check_branch
      %36 = sbr.rel (0) target = $region17
    $region16: #{tpu_custom_call.1} parent=1 // pred_region
      %37 = dma.done [#allocation4], 128
    $region17: #{tpu_custom_call.1} parent=1 // pred_fallthru
      _
    %38 = vsyncpa [#allocation3], 1
    %39 = vsyncpa [#allocation4], 1

</llo_original>
